<compile_context>
chip_gen: v7x
topology: tpu7x:2x2x1
jax: 0.10.0
libtpu: 0.0.40
codegen_flags: <defaults>
</compile_context>

<pallas_src>
import functools
from enum import Enum

import jax
import jax.numpy as jnp
from jax.experimental import pallas as pl
from jax.experimental.pallas import tpu as pltpu


class MLPActivationType(Enum):
    RELU = "relu"
    GELU = "gelu"
    SILU = "silu"
    SIGMOID = "sigmoid"
    BILINEAR = "bilinear"


def _apply_activation(x, activation_type: MLPActivationType):
    if activation_type == MLPActivationType.RELU:
        return jnp.maximum(x, 0.0)
    elif activation_type == MLPActivationType.GELU:
        # torch.nn.functional.gelu default is the exact (erf) form.
        return jax.nn.gelu(x, approximate=False)
    elif activation_type == MLPActivationType.SILU:
        return x * jax.nn.sigmoid(x)
    elif activation_type == MLPActivationType.SIGMOID:
        return jax.nn.sigmoid(x)
    elif activation_type == MLPActivationType.BILINEAR:
        return x
    else:
        raise ValueError(f"Unsupported activation type: {activation_type}")


def _round_up(a: int, b: int) -> int:
    return (a + b - 1) // b * b


def _mlp_lora_kernel(
    *refs,
    activation_type,
    has_lora,
    lora_scale,
    lora_dropout_rate,
    lora_dropout_seed,
):
    if has_lora:
        x_ref, wgu_ref, wd_ref, ar_ref, br_ref, o_ref, acc_ref = refs
    else:
        x_ref, wgu_ref, wd_ref, o_ref, acc_ref = refs
        ar_ref = br_ref = None

    j = pl.program_id(1)
    nf = pl.num_programs(1)
    tf = wd_ref.shape[0]  # static F tile size

    x = x_ref[...]  # [tm, H] in compute dtype

    # ---- init accumulator (and LoRA contribution) on the first F tile ----
    @pl.when(j == 0)
    def _init():
        if has_lora:
            xa = jnp.dot(x, ar_ref[...], preferred_element_type=jnp.float32)
            lora = jnp.dot(
                xa.astype(br_ref.dtype), br_ref[...],
                preferred_element_type=jnp.float32,
            )
            lora = lora * jnp.float32(lora_scale)
            if lora_dropout_rate >= 1.0:
                lora = jnp.zeros_like(lora)
            elif lora_dropout_rate > 0.0:
                # TODO(synk): dropout distribution/scaling match the module,
                # but the RNG stream differs from torch.manual_seed's CPU
                # generator, so the exact mask is not reproducible.
                pltpu.prng_seed(lora_dropout_seed, pl.program_id(0))
                bits = pltpu.bitcast(
                    pltpu.prng_random_bits(lora.shape), jnp.uint32
                )
                thresh = jnp.uint32(
                    min(int(round(lora_dropout_rate * (2 ** 32))), 2 ** 32 - 1)
                )
                keep = bits >= thresh
                inv_keep = jnp.float32(1.0 / (1.0 - lora_dropout_rate))
                lora = jnp.where(keep, lora * inv_keep, 0.0)
            acc_ref[...] = lora
        else:
            acc_ref[...] = jnp.zeros_like(acc_ref)

    # ---- fused gate/up projection for this F tile (single MXU dot) ----
    gu = jnp.dot(x, wgu_ref[...], preferred_element_type=jnp.float32)  # [tm, 2*tf]
    gate = _apply_activation(gu[:, :tf], activation_type)
    up = gu[:, tf:]
    gated = (gate * up).astype(wd_ref.dtype)

    # ---- partial down projection, accumulated in f32 ----
    acc_ref[...] += jnp.dot(gated, wd_ref[...], preferred_element_type=jnp.float32)

    # ---- finalize on the last F tile ----
    @pl.when(j == nf - 1)
    def _finalize():
        o_ref[...] = acc_ref[...].astype(o_ref.dtype)


def dense_mlp_with_lora(
    x,                       # [B, S, H], any float dtype
    W_up, W_gate, W_down,    # [H, F], [H, F], [F, H]  (float32 params)
    A_r=None, B_r=None,      # [H, r], [r, H]          (float32 params)
    *,
    activation_type=MLPActivationType.SILU,
    lora_rank=0,
    lora_alpha=None,
    lora_dropout_rate=0.0,
    lora_dropout_seed=42,
    tile_m=256,              # MXU-aligned row tile (256 for v6e/v7x, 128 ok on v5e)
    tile_f=512,              # ffh tile (multiple of 256)
    compute_dtype=jnp.bfloat16,   # bf16 matmuls w/ f32 accumulation (fast path);
                                  # use jnp.float32 for exact module semantics
    vmem_limit_bytes=48 * 1024 * 1024,
):
    B, S, H = x.shape
    F = W_up.shape[1]
    M = B * S
    out_dtype = x.dtype

    # ---- tile sizing (ragged M / F handled by zero padding) ----
    tile_m = min(_round_up(tile_m, 16), _round_up(M, 16))
    tile_f = min(_round_up(tile_f, 128), _round_up(F, 128))
    M_pad = _round_up(M, tile_m)
    F_pad = _round_up(F, tile_f)
    nf = F_pad // tile_f

    # ---- prepare operands (cast once, outside the kernel) ----
    x2d = x.reshape(M, H).astype(compute_dtype)
    if M_pad > M:
        x2d = jnp.pad(x2d, ((0, M_pad - M), (0, 0)))

    Wg = W_gate.astype(compute_dtype)
    Wu = W_up.astype(compute_dtype)
    Wd = W_down.astype(compute_dtype)
    if F_pad > F:
        Wg = jnp.pad(Wg, ((0, 0), (0, F_pad - F)))
        Wu = jnp.pad(Wu, ((0, 0), (0, F_pad - F)))
        Wd = jnp.pad(Wd, ((0, F_pad - F), (0, 0)))  # zero rows -> no contribution

    # Interleave gate/up per F tile: [gate_tile0 | up_tile0 | gate_tile1 | ...]
    W_gu = jnp.concatenate(
        [Wg.reshape(H, nf, tile_f), Wu.reshape(H, nf, tile_f)], axis=2
    ).reshape(H, 2 * F_pad)

    has_lora = lora_rank > 0
    if has_lora:
        assert A_r is not None and B_r is not None
        la = lora_rank if lora_alpha is None else lora_alpha
        lora_scale = float(la) / float(lora_rank)
        r = A_r.shape[1]
        r_pad = _round_up(r, 128)
        A_p = jnp.pad(A_r.astype(compute_dtype), ((0, 0), (0, r_pad - r)))
        B_p = jnp.pad(B_r.astype(compute_dtype), ((0, r_pad - r), (0, 0)))
    else:
        lora_scale = 0.0
        r_pad = 0
        A_p = B_p = None

    kernel = functools.partial(
        _mlp_lora_kernel,
        activation_type=activation_type,
        has_lora=has_lora,
        lora_scale=lora_scale,
        lora_dropout_rate=float(lora_dropout_rate),
        lora_dropout_seed=int(lora_dropout_seed),
    )

    in_specs = [
        pl.BlockSpec((tile_m, H), lambda i, j: (i, 0)),          # x rows
        pl.BlockSpec((H, 2 * tile_f), lambda i, j: (0, j)),      # fused W_gate|W_up tile
        pl.BlockSpec((tile_f, H), lambda i, j: (j, 0)),          # W_down tile
    ]
    args = [x2d, W_gu, Wd]
    if has_lora:
        in_specs += [
            pl.BlockSpec((H, r_pad), lambda i, j: (0, 0)),       # A_r (constant)
            pl.BlockSpec((r_pad, H), lambda i, j: (0, 0)),       # B_r (constant)
        ]
        args += [A_p, B_p]

    grid = (M_pad // tile_m, nf)

    out2d = pl.pallas_call(
        kernel,
        out_shape=jax.ShapeDtypeStruct((M_pad, H), out_dtype),
        grid_spec=pltpu.PrefetchScalarGridSpec(
            num_scalar_prefetch=0,
            grid=grid,
            in_specs=in_specs,
            out_specs=pl.BlockSpec((tile_m, H), lambda i, j: (i, 0)),
            scratch_shapes=[pltpu.VMEM((tile_m, H), jnp.float32)],
        ),
        compiler_params=pltpu.CompilerParams(
            dimension_semantics=("parallel", "arbitrary"),
            vmem_limit_bytes=vmem_limit_bytes,
        ),
    )(*args)

    return out2d[:M].reshape(B, S, H)


# ----------------------------------------------------------------------------
# Deterministic init helpers (match the module's scheme in spirit: kaiming /
# xavier on W.T) and a plain-JAX reference for verification.
# ----------------------------------------------------------------------------
def _init_weight(key, shape_out_in_T, activation_type):
    out_features, in_features = shape_out_in_T  # W is (in, out); W.T is (out, in)
    if activation_type in (MLPActivationType.SIGMOID, MLPActivationType.BILINEAR):
        std = (2.0 / (in_features + out_features)) ** 0.5       # xavier_normal
    else:
        std = (2.0 / in_features) ** 0.5                        # kaiming_normal
    wT = std * jax.random.normal(key, (out_features, in_features), jnp.float32)
    return wT.T


def _init_lora_weight(key, shape_out_in_T, activation_type):
    out_features, in_features = shape_out_in_T
    if activation_type in (MLPActivationType.SIGMOID, MLPActivationType.BILINEAR):
        bound = (6.0 / (in_features + out_features)) ** 0.5
    else:
        bound = (6.0 / in_features) ** 0.5
    wT = jax.random.uniform(key, (out_features, in_features), jnp.float32,
                            minval=-bound, maxval=bound)
    return wT.T


def _reference(x, W_up, W_gate, W_down, A_r, B_r, *, activation_type,
               lora_rank, lora_alpha, compute_dtype):
    B, S, H = x.shape
    f32 = jnp.float32
    xc = x.reshape(-1, H).astype(compute_dtype)
    gate = _apply_activation(
        jnp.dot(xc, W_gate.astype(compute_dtype), preferred_element_type=f32),
        activation_type)
    up = jnp.dot(xc, W_up.astype(compute_dtype), preferred_element_type=f32)
    gated = (gate * up).astype(compute_dtype)
    out = jnp.dot(gated, W_down.astype(compute_dtype), preferred_element_type=f32)
    if lora_rank > 0:
        scale = (lora_rank if lora_alpha is None else lora_alpha) / lora_rank
        xa = jnp.dot(xc, A_r.astype(compute_dtype), preferred_element_type=f32)
        out = out + scale * jnp.dot(xa.astype(compute_dtype),
                                    B_r.astype(compute_dtype),
                                    preferred_element_type=f32)
    return out.astype(x.dtype).reshape(B, S, H)


if __name__ == "__main__":
    # Small shapes consistent with the module's forward: [batch, seq, hidden].
    batch, seq, hidden, ffh = 2, 8, 32, 64
    lora_rank, lora_alpha = 8, 16.0
    activation_type = MLPActivationType.SILU

    root = jax.random.PRNGKey(0)
    k_x, k_up, k_gate, k_down, k_a, k_b = jax.random.split(root, 6)

    x = jax.random.normal(k_x, (batch, seq, hidden), jnp.float32)

    W_up = _init_weight(k_up, (ffh, hidden), activation_type)
    W_gate = _init_weight(k_gate, (ffh, hidden), activation_type)
    W_down = _init_weight(k_down, (hidden, ffh), activation_type)
    A_r = _init_lora_weight(k_a, (lora_rank, hidden), activation_type)
    B_r = _init_lora_weight(k_b, (hidden, lora_rank), activation_type)

    # 1) float32 compute path: matches the PyTorch module's semantics exactly.
    out_f32 = dense_mlp_with_lora(
        x, W_up, W_gate, W_down, A_r, B_r,
        activation_type=activation_type, lora_rank=lora_rank,
        lora_alpha=lora_alpha, lora_dropout_rate=0.0,
        compute_dtype=jnp.float32)
    jax.block_until_ready(out_f32)
    ref_f32 = _reference(x, W_up, W_gate, W_down, A_r, B_r,
                         activation_type=activation_type, lora_rank=lora_rank,
                         lora_alpha=lora_alpha, compute_dtype=jnp.float32)
    assert out_f32.shape == (batch, seq, hidden)
    assert jnp.allclose(out_f32, ref_f32, atol=1e-4, rtol=1e-4)

    # 2) bf16 fast path (default): compare against a bf16 plain-JAX reference.
    out_bf16 = dense_mlp_with_lora(
        x, W_up, W_gate, W_down, A_r, B_r,
        activation_type=activation_type, lora_rank=lora_rank,
        lora_alpha=lora_alpha, lora_dropout_rate=0.0,
        compute_dtype=jnp.bfloat16)
    jax.block_until_ready(out_bf16)
    ref_bf16 = _reference(x, W_up, W_gate, W_down, A_r, B_r,
                          activation_type=activation_type, lora_rank=lora_rank,
                          lora_alpha=lora_alpha, compute_dtype=jnp.bfloat16)
    assert jnp.allclose(out_bf16, ref_bf16, atol=2e-2, rtol=2e-2)

    # 3) lora_rank == 0 variant (kernel compiled without A_r / B_r refs).
    out_nolora = dense_mlp_with_lora(
        x, W_up, W_gate, W_down,
        activation_type=activation_type, lora_rank=0,
        compute_dtype=jnp.float32)
    jax.block_until_ready(out_nolora)
    ref_nolora = _reference(x, W_up, W_gate, W_down, None, None,
                            activation_type=activation_type, lora_rank=0,
                            lora_alpha=None, compute_dtype=jnp.float32)
    assert jnp.allclose(out_nolora, ref_nolora, atol=1e-4, rtol=1e-4)

    print("KERNEL_OK")
</pallas_src>

<mosaic_0001>
module attributes {stable_mosaic.version = 11 : i64} {
  func.func @_mlp_lora_kernel(%arg0: i32, %arg1: i32, %arg2: memref<16x32xf32, #tpu.memory_space<vmem>>, %arg3: memref<32x256xf32, #tpu.memory_space<vmem>>, %arg4: memref<128x32xf32, #tpu.memory_space<vmem>>, %arg5: memref<32x128xf32, #tpu.memory_space<vmem>>, %arg6: memref<128x32xf32, #tpu.memory_space<vmem>>, %arg7: memref<16x32xf32, #tpu.memory_space<vmem>>, %arg8: memref<16x32xf32, #tpu.memory_space<vmem>>) attributes {dimension_semantics = [#tpu.dimension_semantics<parallel>, #tpu.dimension_semantics<arbitrary>], iteration_bounds = array<i64: 1, 1>, scalar_prefetch = 0 : i64, scratch_operands = 1 : i64, tpu.core_type = #tpu.core_type<tc>, window_params = [{transform_indices = @transform_0, window_bounds = array<i64: 16, 32>}, {transform_indices = @transform_1, window_bounds = array<i64: 32, 256>}, {transform_indices = @transform_2, window_bounds = array<i64: 128, 32>}, {pipeline_mode = #tpu.pipeline_mode<synchronous>, transform_indices = @transform_3, window_bounds = array<i64: 32, 128>}, {pipeline_mode = #tpu.pipeline_mode<synchronous>, transform_indices = @transform_4, window_bounds = array<i64: 128, 32>}, {transform_indices = @transform_5, window_bounds = array<i64: 16, 32>}]} {
    %c0 = arith.constant 0 : index
    %c0_0 = arith.constant 0 : index
    %0 = vector.load %arg2[%c0, %c0_0] : memref<16x32xf32, #tpu.memory_space<vmem>>, vector<16x32xf32>
    %c0_i32 = arith.constant 0 : i32
    %1 = arith.cmpi eq, %arg1, %c0_i32 : i32
    %2 = arith.extui %1 : i1 to i32
    %c0_i32_1 = arith.constant 0 : i32
    %3 = arith.cmpi ne, %2, %c0_i32_1 : i32
    scf.if %3 {
      %c0_14 = arith.constant 0 : index
      %c0_15 = arith.constant 0 : index
      %23 = vector.load %arg5[%c0_14, %c0_15] : memref<32x128xf32, #tpu.memory_space<vmem>>, vector<32x128xf32>
      %cst_16 = arith.constant dense<0.000000e+00> : vector<16x128xf32>
      %24 = tpu.matmul %0, %23, %cst_16 {dimension_numbers = #tpu.dot_dimension_numbers<[1], [0], [0], [1], [0, 0, 1, 1], [], []>} : vector<16x32xf32>, vector<32x128xf32>, vector<16x128xf32> -> vector<16x128xf32>
      %c0_17 = arith.constant 0 : index
      %c0_18 = arith.constant 0 : index
      %25 = vector.load %arg6[%c0_17, %c0_18] : memref<128x32xf32, #tpu.memory_space<vmem>>, vector<128x32xf32>
      %cst_19 = arith.constant dense<0.000000e+00> : vector<16x32xf32>
      %26 = tpu.matmul %24, %25, %cst_19 {dimension_numbers = #tpu.dot_dimension_numbers<[1], [0], [0], [1], [0, 0, 1, 1], [], []>} : vector<16x128xf32>, vector<128x32xf32>, vector<16x32xf32> -> vector<16x32xf32>
      %cst_20 = arith.constant 2.000000e+00 : f32
      %27 = vector.broadcast %cst_20 : f32 to vector<16x32xf32>
      %28 = arith.mulf %26, %27 : vector<16x32xf32>
      %c0_21 = arith.constant 0 : index
      %c0_22 = arith.constant 0 : index
      %29 = vector.load %arg8[%c0_21, %c0_22] : memref<16x32xf32, #tpu.memory_space<vmem>>, vector<16x32xf32>
      tpu.vector_store %arg8[%c0_21, %c0_22], %28 {strides = array<i32>} : memref<16x32xf32, #tpu.memory_space<vmem>>, vector<16x32xf32>,
    } else {
    }
    %c0_2 = arith.constant 0 : index
    %c0_3 = arith.constant 0 : index
    %4 = vector.load %arg3[%c0_2, %c0_3] : memref<32x256xf32, #tpu.memory_space<vmem>>, vector<32x256xf32>
    %cst = arith.constant dense<0.000000e+00> : vector<16x256xf32>
    %5 = tpu.matmul %0, %4, %cst {dimension_numbers = #tpu.dot_dimension_numbers<[1], [0], [0], [1], [0, 0, 1, 1], [], []>} : vector<16x32xf32>, vector<32x256xf32>, vector<16x256xf32> -> vector<16x256xf32>
    %6 = vector.extract_strided_slice %5 {offsets = [0, 0], sizes = [16, 128], strides = [1, 1]} : vector<16x256xf32> to vector<16x128xf32>
    %7 = arith.negf %6 : vector<16x128xf32>
    %8 = math.exp %7 : vector<16x128xf32>
    %cst_4 = arith.constant 1.000000e+00 : f32
    %9 = vector.broadcast %cst_4 : f32 to vector<16x128xf32>
    %10 = arith.addf %9, %8 : vector<16x128xf32>
    %11 = arith.divf %9, %10 : vector<16x128xf32>
    %12 = arith.mulf %6, %11 : vector<16x128xf32>
    %13 = vector.extract_strided_slice %5 {offsets = [0, 128], sizes = [16, 128], strides = [1, 1]} : vector<16x256xf32> to vector<16x128xf32>
    %14 = arith.mulf %12, %13 : vector<16x128xf32>
    %c0_5 = arith.constant 0 : index
    %c0_6 = arith.constant 0 : index
    %15 = vector.load %arg8[%c0_5, %c0_6] : memref<16x32xf32, #tpu.memory_space<vmem>>, vector<16x32xf32>
    %c0_7 = arith.constant 0 : index
    %c0_8 = arith.constant 0 : index
    %16 = vector.load %arg4[%c0_7, %c0_8] : memref<128x32xf32, #tpu.memory_space<vmem>>, vector<128x32xf32>
    %cst_9 = arith.constant dense<0.000000e+00> : vector<16x32xf32>
    %17 = tpu.matmul %14, %16, %cst_9 {dimension_numbers = #tpu.dot_dimension_numbers<[1], [0], [0], [1], [0, 0, 1, 1], [], []>} : vector<16x128xf32>, vector<128x32xf32>, vector<16x32xf32> -> vector<16x32xf32>
    %18 = arith.addf %15, %17 : vector<16x32xf32>
    %c0_10 = arith.constant 0 : index
    %c0_11 = arith.constant 0 : index
    %19 = vector.load %arg8[%c0_10, %c0_11] : memref<16x32xf32, #tpu.memory_space<vmem>>, vector<16x32xf32>
    tpu.vector_store %arg8[%c0_10, %c0_11], %18 {strides = array<i32>} : memref<16x32xf32, #tpu.memory_space<vmem>>, vector<16x32xf32>,
    %c0_i32_12 = arith.constant 0 : i32
    %20 = arith.cmpi eq, %arg1, %c0_i32_12 : i32
    %21 = arith.extui %20 : i1 to i32
    %c0_i32_13 = arith.constant 0 : i32
    %22 = arith.cmpi ne, %21, %c0_i32_13 : i32
    scf.if %22 {
      %c0_14 = arith.constant 0 : index
      %c0_15 = arith.constant 0 : index
      %23 = vector.load %arg8[%c0_14, %c0_15] : memref<16x32xf32, #tpu.memory_space<vmem>>, vector<16x32xf32>
      %c0_16 = arith.constant 0 : index
      %c0_17 = arith.constant 0 : index
      %24 = vector.load %arg7[%c0_16, %c0_17] : memref<16x32xf32, #tpu.memory_space<vmem>>, vector<16x32xf32>
      tpu.vector_store %arg7[%c0_16, %c0_17], %23 {strides = array<i32>} : memref<16x32xf32, #tpu.memory_space<vmem>>, vector<16x32xf32>,
    } else {
    }
    return
  }
  func.func @transform_0(%arg0: i32, %arg1: i32) -> (i32, i32) {
    %c0_i32 = arith.constant 0 : i32
    %c0_i32_0 = arith.constant 0 : i32
    return %arg0, %c0_i32 : i32, i32
  }
  func.func @transform_1(%arg0: i32, %arg1: i32) -> (i32, i32) {
    %c0_i32 = arith.constant 0 : i32
    %c0_i32_0 = arith.constant 0 : i32
    return %c0_i32, %arg1 : i32, i32
  }
  func.func @transform_2(%arg0: i32, %arg1: i32) -> (i32, i32) {
    %c0_i32 = arith.constant 0 : i32
    %c0_i32_0 = arith.constant 0 : i32
    return %arg1, %c0_i32 : i32, i32
  }
  func.func @transform_3(%arg0: i32, %arg1: i32) -> (i32, i32) {
    %c0_i32 = arith.constant 0 : i32
    %c0_i32_0 = arith.constant 0 : i32
    %c0_i32_1 = arith.constant 0 : i32
    return %c0_i32, %c0_i32_0 : i32, i32
  }
  func.func @transform_4(%arg0: i32, %arg1: i32) -> (i32, i32) {
    %c0_i32 = arith.constant 0 : i32
    %c0_i32_0 = arith.constant 0 : i32
    %c0_i32_1 = arith.constant 0 : i32
    return %c0_i32, %c0_i32_0 : i32, i32
  }
  func.func @transform_5(%arg0: i32, %arg1: i32) -> (i32, i32) {
    %c0_i32 = arith.constant 0 : i32
    %c0_i32_0 = arith.constant 0 : i32
    return %arg0, %c0_i32 : i32, i32
  }
}

</mosaic_0001>

<llo_original>
// kernel: tpu_custom_call.1
$region0: #{tpu_custom_call.1}
  #allocation0 [shape = 'u32[]', space=smem, size = 0x4, offset = 0x4, fixed_abs, tag = 'smem constant byte address 0x4 - core index']
  #allocation1 [shape = 'u32[144,128]{1,0:T(1,128)}', space=vmem, size = 0x12000, scoped, tag = 'internal scratch']
  #allocation2 [shape = 'f32[16,32]{1,0:T(8,128)}', space=vmem, size = 0x2000, scoped, tag = 'scratch operand']
  %s0 = inlined_call_operand.vmem [shape: f32[16,32], index: 0, kind: input, shape index: {}]
  %s1 = inlined_call_operand.vmem [shape: f32[32,256], index: 1, kind: input, shape index: {}]
  %s2 = inlined_call_operand.vmem [shape: f32[128,32], index: 2, kind: input, shape index: {}]
  %s3 = inlined_call_operand.vmem [shape: f32[32,128], index: 3, kind: input, shape index: {}]
  %s4 = inlined_call_operand.vmem [shape: f32[128,32], index: 4, kind: input, shape index: {}]
  %s5 = inlined_call_operand.hbm [shape: f32[16,32], index: 5, kind: output, shape index: {}]
  %s6 = sld [smem:[#allocation0]]
  $region38: #{tpu_custom_call.1} parent=0
    _
  %s8 = ssub.s32 1, %s6
  %s9 = scalar_select 0, %s8, %s6
  $region1: #{tpu_custom_call.1} parent=0
    #allocation3 [shape = 'u8[8192]{0}', space=vmem, size = 0x2000, scoped, tag = 'output window, operand 0, single buffered']
    #allocation4 [shape = 's32[1]{0}', space=sflag, size = 0x4, scoped, tag = 'scoped memory for tpu_custom_call.1']
    %10 = vsyncpa [#allocation4], 0
    // Predicated region
    $region2: #{tpu_custom_call.1} parent=1 // pred_check
      _
    $region3: #{tpu_custom_call.1} parent=1 // pred_check_branch
      %12 = sbr.rel (0) target = $region5
    $region4: #{tpu_custom_call.1} parent=1 // pred_region
      _
    $region5: #{tpu_custom_call.1} parent=1 // pred_fallthru
      _
    // Predicated region
    $region6: #{tpu_custom_call.1} parent=1 // pred_check
      _
    $region7: #{tpu_custom_call.1} parent=1 // pred_check_branch
      %14 = sbr.rel (0) target = $region9
    $region8: #{tpu_custom_call.1} parent=1 // pred_region
      _
    $region9: #{tpu_custom_call.1} parent=1 // pred_fallthru
      _
    // Predicated region
    $region10: #{tpu_custom_call.1} parent=1 // pred_check
      _
    $region11: #{tpu_custom_call.1} parent=1 // pred_check_branch
      %16 = sbr.rel (0) target = $region13
    $region12: #{tpu_custom_call.1} parent=1 // pred_region
      _
    $region13: #{tpu_custom_call.1} parent=1 // pred_fallthru
      _
    // Predicated region
    $region14: #{tpu_custom_call.1} parent=1 // pred_check
      _
    $region15: #{tpu_custom_call.1} parent=1 // pred_check_branch
      %18 = sbr.rel (0) target = $region17
    $region16: #{tpu_custom_call.1} parent=1 // pred_region
      _
    $region17: #{tpu_custom_call.1} parent=1 // pred_fallthru
      _
    // Predicated region
    $region18: #{tpu_custom_call.1} parent=1 // pred_check
      _
    $region19: #{tpu_custom_call.1} parent=1 // pred_check_branch
      %20 = sbr.rel (0) target = $region21
    $region20: #{tpu_custom_call.1} parent=1 // pred_region
      _
    $region21: #{tpu_custom_call.1} parent=1 // pred_fallthru
      _
    %v21 = vld [vmem:[%s0] sm:$0xff]
    %v22 = vld [vmem:[%s0 + $0x8] sm:$0xff]
    %p23 = scmp.eq.s32.totalorder 0, 0
    // Predicated region
    $region22: #{tpu_custom_call.1} parent=1 // pred_check
      %p24 = pneg %p23
    $region23: #{tpu_custom_call.1} parent=1 // pred_check_branch
      %26 = sbr.rel (%p24) target = $region25
    $region24: #{tpu_custom_call.1} parent=1 // pred_region
      %v27 = vld [vmem:[%s3] sm:$0xff]
      %v28 = vld [vmem:[%s3 + $0x8] sm:$0xff]
      %v29 = vld [vmem:[%s3 + $0x10] sm:$0xff]
      %v30 = vld [vmem:[%s3 + $0x18] sm:$0xff]
      %vm31 = vcmask 261120
      %v33 = vsel %vm31, %v21, 0
      %v36 = vsel %vm31, %v22, 0
      %38 = vmatprep.subr.mxu0 0.0
      %39 = vmatpush1.msra.mxu0 %v27
      %40 = vmatprep.subr.mxu0 0.0
      %41 = vmatpush1.msra.mxu0 %v28
      %42 = vmatprep.subr.mxu0 0.0
      %43 = vmatpush1.msra.mxu0 %v29
      %44 = vmatprep.subr.mxu0 0.0
      %45 = vmatpush1.msra.mxu0 %v30
      %46 = vmatprep.subr.mxu0 0.0
      %47 = vmatpush1.msra.mxu0 0.0
      %48 = vmatprep.subr.mxu0 0.0
      %49 = vmatpush1.msra.mxu0 0.0
      %50 = vmatprep.subr.mxu0 0.0
      %51 = vmatpush1.msra.mxu0 0.0
      %52 = vmatprep.subr.mxu0 0.0
      %53 = vmatpush1.msra.mxu0 0.0
      %54 = vmatprep.subr.mxu0 0.0
      %55 = vmatpush1.msra.mxu0 0.0
      %56 = vmatprep.subr.mxu0 0.0
      %57 = vmatpush1.msra.mxu0 0.0
      %58 = vmatprep.subr.mxu0 0.0
      %59 = vmatpush1.msra.mxu0 0.0
      %60 = vmatprep.subr.mxu0 0.0
      %61 = vmatpush1.msra.mxu0 0.0
      %62 = vmatprep.subr.mxu0 0.0
      %63 = vmatpush1.msra.mxu0 0.0
      %64 = vmatprep.subr.mxu0 0.0
      %65 = vmatpush1.msra.mxu0 0.0
      %66 = vmatprep.subr.mxu0 0.0
      %67 = vmatpush1.msra.mxu0 0.0
      %68 = vmatprep.subr.mxu0 0.0
      %69 = vmatpush1.msra.mxu0 0.0
      %70 = vmatprep.subr.mxu0 0.0
      %71 = vmatpush1.msra.mxu0 0.0
      %72 = vmatprep.subr.mxu0 0.0
      %73 = vmatpush1.msra.mxu0 0.0
      %74 = vmatprep.subr.mxu0 0.0
      %75 = vmatpush1.msra.mxu0 0.0
      %76 = vmatprep.subr.mxu0 0.0
      %77 = vmatpush1.msra.mxu0 0.0
      %78 = vmatprep.subr.mxu0 0.0
      %79 = vmatpush1.msra.mxu0 0.0
      %80 = vmatprep.subr.mxu0 0.0
      %81 = vmatpush1.msra.mxu0 0.0
      %82 = vmatprep.subr.mxu0 0.0
      %83 = vmatpush1.msra.mxu0 0.0
      %84 = vmatprep.subr.mxu0 0.0
      %85 = vmatpush1.msra.mxu0 0.0
      %86 = vmatprep.subr.mxu0 0.0
      %87 = vmatpush1.msra.mxu0 0.0
      %88 = vmatprep.subr.mxu0 0.0
      %89 = vmatpush1.msra.mxu0 0.0
      %90 = vmatprep.subr.mxu0 0.0
      %91 = vmatpush1.msra.mxu0 0.0
      %92 = vmatprep.subr.mxu0 0.0
      %93 = vmatpush1.msra.mxu0 0.0
      %94 = vmatprep.subr.mxu0 0.0
      %95 = vmatpush1.msra.mxu0 0.0
      %96 = vmatprep.subr.mxu0 0.0
      %97 = vmatpush1.msra.mxu0 0.0
      %98 = vmatprep.subr.mxu0 0.0
      %99 = vmatpush1.msra.mxu0 0.0
      %100 = vmatprep.subr.mxu0 0.0
      %101 = vmatpush1.msra.mxu0 0.0
      %102 = vmatprep.mubr.f32.mxu0 0.0
      %103 = vmatmul.mubr.f32.gmra.mrb[0].mxu0 %v33
      %v104 = vpop.f32.mrb[0].mxu0
      %v105 = vadd.f32 0.0, %v104
      %v106 = vpop.f32.mrb[0].mxu0
      %107 = vmatprep.mubr.f32.mxu0 0.0
      %108 = vmatmul.mubr.f32.gmra.mrb[0].mxu0 %v36
      %v109 = vpop.f32.mrb[0].mxu0
      %v110 = vadd.f32 0.0, %v109
      %v111 = vpop.f32.mrb[0].mxu0
      %112 = vdwg.mxu0
      %v113 = vld [vmem:[%s4] sm:$0xff]
      %v114 = vld [vmem:[%s4 + $0x8] sm:$0xff]
      %v115 = vld [vmem:[%s4 + $0x10] sm:$0xff]
      %v116 = vld [vmem:[%s4 + $0x18] sm:$0xff]
      %v117 = vld [vmem:[%s4 + $0x20] sm:$0xff]
      %v118 = vld [vmem:[%s4 + $0x28] sm:$0xff]
      %v119 = vld [vmem:[%s4 + $0x30] sm:$0xff]
      %v120 = vld [vmem:[%s4 + $0x38] sm:$0xff]
      %v121 = vld [vmem:[%s4 + $0x40] sm:$0xff]
      %v122 = vld [vmem:[%s4 + $0x48] sm:$0xff]
      %v123 = vld [vmem:[%s4 + $0x50] sm:$0xff]
      %v124 = vld [vmem:[%s4 + $0x58] sm:$0xff]
      %v125 = vld [vmem:[%s4 + $0x60] sm:$0xff]
      %v126 = vld [vmem:[%s4 + $0x68] sm:$0xff]
      %v127 = vld [vmem:[%s4 + $0x70] sm:$0xff]
      %v128 = vld [vmem:[%s4 + $0x78] sm:$0xff]
      %129 = vmatprep.subr.mxu0 0.0
      %130 = vmatpush1.msra.mxu0 %v113
      %131 = vmatprep.subr.mxu0 0.0
      %132 = vmatpush1.msra.mxu0 %v114
      %133 = vmatprep.subr.mxu0 0.0
      %134 = vmatpush1.msra.mxu0 %v115
      %135 = vmatprep.subr.mxu0 0.0
      %136 = vmatpush1.msra.mxu0 %v116
      %137 = vmatprep.subr.mxu0 0.0
      %138 = vmatpush1.msra.mxu0 %v117
      %139 = vmatprep.subr.mxu0 0.0
      %140 = vmatpush1.msra.mxu0 %v118
      %141 = vmatprep.subr.mxu0 0.0
      %142 = vmatpush1.msra.mxu0 %v119
      %143 = vmatprep.subr.mxu0 0.0
      %144 = vmatpush1.msra.mxu0 %v120
      %145 = vmatprep.subr.mxu0 0.0
      %146 = vmatpush1.msra.mxu0 %v121
      %147 = vmatprep.subr.mxu0 0.0
      %148 = vmatpush1.msra.mxu0 %v122
      %149 = vmatprep.subr.mxu0 0.0
      %150 = vmatpush1.msra.mxu0 %v123
      %151 = vmatprep.subr.mxu0 0.0
      %152 = vmatpush1.msra.mxu0 %v124
      %153 = vmatprep.subr.mxu0 0.0
      %154 = vmatpush1.msra.mxu0 %v125
      %155 = vmatprep.subr.mxu0 0.0
      %156 = vmatpush1.msra.mxu0 %v126
      %157 = vmatprep.subr.mxu0 0.0
      %158 = vmatpush1.msra.mxu0 %v127
      %159 = vmatprep.subr.mxu0 0.0
      %160 = vmatpush1.msra.mxu0 %v128
      %161 = vmatprep.subr.mxu0 0.0
      %162 = vmatpush1.msra.mxu0 0.0
      %163 = vmatprep.subr.mxu0 0.0
      %164 = vmatpush1.msra.mxu0 0.0
      %165 = vmatprep.subr.mxu0 0.0
      %166 = vmatpush1.msra.mxu0 0.0
      %167 = vmatprep.subr.mxu0 0.0
      %168 = vmatpush1.msra.mxu0 0.0
      %169 = vmatprep.subr.mxu0 0.0
      %170 = vmatpush1.msra.mxu0 0.0
      %171 = vmatprep.subr.mxu0 0.0
      %172 = vmatpush1.msra.mxu0 0.0
      %173 = vmatprep.subr.mxu0 0.0
      %174 = vmatpush1.msra.mxu0 0.0
      %175 = vmatprep.subr.mxu0 0.0
      %176 = vmatpush1.msra.mxu0 0.0
      %177 = vmatprep.subr.mxu0 0.0
      %178 = vmatpush1.msra.mxu0 0.0
      %179 = vmatprep.subr.mxu0 0.0
      %180 = vmatpush1.msra.mxu0 0.0
      %181 = vmatprep.subr.mxu0 0.0
      %182 = vmatpush1.msra.mxu0 0.0
      %183 = vmatprep.subr.mxu0 0.0
      %184 = vmatpush1.msra.mxu0 0.0
      %185 = vmatprep.subr.mxu0 0.0
      %186 = vmatpush1.msra.mxu0 0.0
      %187 = vmatprep.subr.mxu0 0.0
      %188 = vmatpush1.msra.mxu0 0.0
      %189 = vmatprep.subr.mxu0 0.0
      %190 = vmatpush1.msra.mxu0 0.0
      %191 = vmatprep.subr.mxu0 0.0
      %192 = vmatpush1.msra.mxu0 0.0
      %193 = vmatprep.mubr.f32.mxu0 0.0
      %194 = vmatmul.mubr.f32.gmra.mrb[0].mxu0 %v105
      %v195 = vpop.f32.mrb[0].mxu0
      %v196 = vadd.f32 0.0, %v195
      %v197 = vpop.f32.mrb[0].mxu0
      %198 = vmatprep.mubr.f32.mxu0 0.0
      %199 = vmatmul.mubr.f32.gmra.mrb[0].mxu0 %v110
      %v200 = vpop.f32.mrb[0].mxu0
      %v201 = vadd.f32 0.0, %v200
      %v202 = vpop.f32.mrb[0].mxu0
      %203 = vdwg.mxu0
      %v204 = vmul.f32 %v196, 2.0
      %v205 = vmul.f32 %v201, 2.0
      %206 = vst.msk [vmem:[#allocation2] sm:$0xff] %vm31, %v204
      %207 = vst.msk [vmem:[#allocation2 + $0x8] sm:$0xff] %vm31, %v205
    $region25: #{tpu_custom_call.1} parent=1 // pred_fallthru
      _
    %v208 = vld [vmem:[%s1] sm:$0xff]
    %v209 = vld [vmem:[%s1 + $0x8] sm:$0xff]
    %v210 = vld [vmem:[%s1 + $0x10] sm:$0xff]
    %v211 = vld [vmem:[%s1 + $0x18] sm:$0xff]
    %v212 = vld [vmem:[%s1 + $0x20] sm:$0xff]
    %v213 = vld [vmem:[%s1 + $0x28] sm:$0xff]
    %v214 = vld [vmem:[%s1 + $0x30] sm:$0xff]
    %v215 = vld [vmem:[%s1 + $0x38] sm:$0xff]
    %vm216 = vcmask 261120
    %v218 = vsel %vm216, %v21, 0
    %v221 = vsel %vm216, %v22, 0
    %223 = vmatprep.subr.mxu0 %v209
    %224 = vmatpush1.msra.mxu0 %v208
    %225 = vmatprep.subr.mxu0 %v211
    %226 = vmatpush1.msra.mxu0 %v210
    %227 = vmatprep.subr.mxu0 %v213
    %228 = vmatpush1.msra.mxu0 %v212
    %229 = vmatprep.subr.mxu0 %v215
    %230 = vmatpush1.msra.mxu0 %v214
    %231 = vmatprep.subr.mxu0 0.0
    %232 = vmatpush1.msra.mxu0 0.0
    %233 = vmatprep.subr.mxu0 0.0
    %234 = vmatpush1.msra.mxu0 0.0
    %235 = vmatprep.subr.mxu0 0.0
    %236 = vmatpush1.msra.mxu0 0.0
    %237 = vmatprep.subr.mxu0 0.0
    %238 = vmatpush1.msra.mxu0 0.0
    %239 = vmatprep.subr.mxu0 0.0
    %240 = vmatpush1.msra.mxu0 0.0
    %241 = vmatprep.subr.mxu0 0.0
    %242 = vmatpush1.msra.mxu0 0.0
    %243 = vmatprep.subr.mxu0 0.0
    %244 = vmatpush1.msra.mxu0 0.0
    %245 = vmatprep.subr.mxu0 0.0
    %246 = vmatpush1.msra.mxu0 0.0
    %247 = vmatprep.subr.mxu0 0.0
    %248 = vmatpush1.msra.mxu0 0.0
    %249 = vmatprep.subr.mxu0 0.0
    %250 = vmatpush1.msra.mxu0 0.0
    %251 = vmatprep.subr.mxu0 0.0
    %252 = vmatpush1.msra.mxu0 0.0
    %253 = vmatprep.subr.mxu0 0.0
    %254 = vmatpush1.msra.mxu0 0.0
    %255 = vmatprep.subr.mxu0 0.0
    %256 = vmatpush1.msra.mxu0 0.0
    %257 = vmatprep.subr.mxu0 0.0
    %258 = vmatpush1.msra.mxu0 0.0
    %259 = vmatprep.subr.mxu0 0.0
    %260 = vmatpush1.msra.mxu0 0.0
    %261 = vmatprep.subr.mxu0 0.0
    %262 = vmatpush1.msra.mxu0 0.0
    %263 = vmatprep.subr.mxu0 0.0
    %264 = vmatpush1.msra.mxu0 0.0
    %265 = vmatprep.subr.mxu0 0.0
    %266 = vmatpush1.msra.mxu0 0.0
    %267 = vmatprep.subr.mxu0 0.0
    %268 = vmatpush1.msra.mxu0 0.0
    %269 = vmatprep.subr.mxu0 0.0
    %270 = vmatpush1.msra.mxu0 0.0
    %271 = vmatprep.subr.mxu0 0.0
    %272 = vmatpush1.msra.mxu0 0.0
    %273 = vmatprep.subr.mxu0 0.0
    %274 = vmatpush1.msra.mxu0 0.0
    %275 = vmatprep.subr.mxu0 0.0
    %276 = vmatpush1.msra.mxu0 0.0
    %277 = vmatprep.subr.mxu0 0.0
    %278 = vmatpush1.msra.mxu0 0.0
    %279 = vmatprep.subr.mxu0 0.0
    %280 = vmatpush1.msra.mxu0 0.0
    %281 = vmatprep.subr.mxu0 0.0
    %282 = vmatpush1.msra.mxu0 0.0
    %283 = vmatprep.subr.mxu0 0.0
    %284 = vmatpush1.msra.mxu0 0.0
    %285 = vmatprep.subr.mxu0 0.0
    %286 = vmatpush1.msra.mxu0 0.0
    %287 = vmatprep.mubr.f32.mxu0 0.0
    %288 = vmatmul.mubr.f32.gmra.mrb[0].mxu0 %v218
    %v289 = vpop.f32.mrb[0].mxu0
    %v290 = vadd.f32 0.0, %v289
    %v291 = vpop.f32.mrb[0].mxu0
    %v292 = vadd.f32 0.0, %v291
    %293 = vmatprep.mubr.f32.mxu0 0.0
    %294 = vmatmul.mubr.f32.gmra.mrb[0].mxu0 %v221
    %v295 = vpop.f32.mrb[0].mxu0
    %v296 = vadd.f32 0.0, %v295
    %v297 = vpop.f32.mrb[0].mxu0
    %v298 = vadd.f32 0.0, %v297
    %299 = vdwg.mxu0
    %v300 = vxor.u32 %v290, 2147483648
    %v301 = vxor.u32 %v296, 2147483648
    %v302 = vmul.f32 %v300, 1.442695
    %v303 = vpow.pop %v302
    %v304 = vmul.f32 %v301, 1.442695
    %v305 = vpow.pop %v304
    %v306 = vadd.f32 %v303, 1.0
    %v307 = vadd.f32 %v305, 1.0
    %v308 = vrcp.pop %v306
    %v309 = vmul.f32 1.0, %v308
    %v310 = vrcp.pop %v307
    %v311 = vmul.f32 1.0, %v310
    %v312 = vmul.f32 %v290, %v309
    %v313 = vmul.f32 %v296, %v311
    %v314 = vmul.f32 %v312, %v292
    %v315 = vmul.f32 %v313, %v298
    %v316 = vld [vmem:[#allocation2] sm:$0xff]
    %v317 = vld [vmem:[#allocation2 + $0x8] sm:$0xff]
    %v318 = vld [vmem:[%s2] sm:$0xff]
    %v319 = vld [vmem:[%s2 + $0x8] sm:$0xff]
    %v320 = vld [vmem:[%s2 + $0x10] sm:$0xff]
    %v321 = vld [vmem:[%s2 + $0x18] sm:$0xff]
    %v322 = vld [vmem:[%s2 + $0x20] sm:$0xff]
    %v323 = vld [vmem:[%s2 + $0x28] sm:$0xff]
    %v324 = vld [vmem:[%s2 + $0x30] sm:$0xff]
    %v325 = vld [vmem:[%s2 + $0x38] sm:$0xff]
    %v326 = vld [vmem:[%s2 + $0x40] sm:$0xff]
    %v327 = vld [vmem:[%s2 + $0x48] sm:$0xff]
    %v328 = vld [vmem:[%s2 + $0x50] sm:$0xff]
    %v329 = vld [vmem:[%s2 + $0x58] sm:$0xff]
    %v330 = vld [vmem:[%s2 + $0x60] sm:$0xff]
    %v331 = vld [vmem:[%s2 + $0x68] sm:$0xff]
    %v332 = vld [vmem:[%s2 + $0x70] sm:$0xff]
    %v333 = vld [vmem:[%s2 + $0x78] sm:$0xff]
    %334 = vmatprep.subr.mxu0 0.0
    %335 = vmatpush1.msra.mxu0 %v318
    %336 = vmatprep.subr.mxu0 0.0
    %337 = vmatpush1.msra.mxu0 %v319
    %338 = vmatprep.subr.mxu0 0.0
    %339 = vmatpush1.msra.mxu0 %v320
    %340 = vmatprep.subr.mxu0 0.0
    %341 = vmatpush1.msra.mxu0 %v321
    %342 = vmatprep.subr.mxu0 0.0
    %343 = vmatpush1.msra.mxu0 %v322
    %344 = vmatprep.subr.mxu0 0.0
    %345 = vmatpush1.msra.mxu0 %v323
    %346 = vmatprep.subr.mxu0 0.0
    %347 = vmatpush1.msra.mxu0 %v324
    %348 = vmatprep.subr.mxu0 0.0
    %349 = vmatpush1.msra.mxu0 %v325
    %350 = vmatprep.subr.mxu0 0.0
    %351 = vmatpush1.msra.mxu0 %v326
    %352 = vmatprep.subr.mxu0 0.0
    %353 = vmatpush1.msra.mxu0 %v327
    %354 = vmatprep.subr.mxu0 0.0
    %355 = vmatpush1.msra.mxu0 %v328
    %356 = vmatprep.subr.mxu0 0.0
    %357 = vmatpush1.msra.mxu0 %v329
    %358 = vmatprep.subr.mxu0 0.0
    %359 = vmatpush1.msra.mxu0 %v330
    %360 = vmatprep.subr.mxu0 0.0
    %361 = vmatpush1.msra.mxu0 %v331
    %362 = vmatprep.subr.mxu0 0.0
    %363 = vmatpush1.msra.mxu0 %v332
    %364 = vmatprep.subr.mxu0 0.0
    %365 = vmatpush1.msra.mxu0 %v333
    %366 = vmatprep.subr.mxu0 0.0
    %367 = vmatpush1.msra.mxu0 0.0
    %368 = vmatprep.subr.mxu0 0.0
    %369 = vmatpush1.msra.mxu0 0.0
    %370 = vmatprep.subr.mxu0 0.0
    %371 = vmatpush1.msra.mxu0 0.0
    %372 = vmatprep.subr.mxu0 0.0
    %373 = vmatpush1.msra.mxu0 0.0
    %374 = vmatprep.subr.mxu0 0.0
    %375 = vmatpush1.msra.mxu0 0.0
    %376 = vmatprep.subr.mxu0 0.0
    %377 = vmatpush1.msra.mxu0 0.0
    %378 = vmatprep.subr.mxu0 0.0
    %379 = vmatpush1.msra.mxu0 0.0
    %380 = vmatprep.subr.mxu0 0.0
    %381 = vmatpush1.msra.mxu0 0.0
    %382 = vmatprep.subr.mxu0 0.0
    %383 = vmatpush1.msra.mxu0 0.0
    %384 = vmatprep.subr.mxu0 0.0
    %385 = vmatpush1.msra.mxu0 0.0
    %386 = vmatprep.subr.mxu0 0.0
    %387 = vmatpush1.msra.mxu0 0.0
    %388 = vmatprep.subr.mxu0 0.0
    %389 = vmatpush1.msra.mxu0 0.0
    %390 = vmatprep.subr.mxu0 0.0
    %391 = vmatpush1.msra.mxu0 0.0
    %392 = vmatprep.subr.mxu0 0.0
    %393 = vmatpush1.msra.mxu0 0.0
    %394 = vmatprep.subr.mxu0 0.0
    %395 = vmatpush1.msra.mxu0 0.0
    %396 = vmatprep.subr.mxu0 0.0
    %397 = vmatpush1.msra.mxu0 0.0
    %398 = vmatprep.mubr.f32.mxu0 0.0
    %399 = vmatmul.mubr.f32.gmra.mrb[0].mxu0 %v314
    %v400 = vpop.f32.mrb[0].mxu0
    %v401 = vadd.f32 0.0, %v400
    %v402 = vpop.f32.mrb[0].mxu0
    %403 = vmatprep.mubr.f32.mxu0 0.0
    %404 = vmatmul.mubr.f32.gmra.mrb[0].mxu0 %v315
    %v405 = vpop.f32.mrb[0].mxu0
    %v406 = vadd.f32 0.0, %v405
    %v407 = vpop.f32.mrb[0].mxu0
    %408 = vdwg.mxu0
    %v409 = vadd.f32 %v316, %v401
    %v410 = vadd.f32 %v317, %v406
    %411 = vst.msk [vmem:[#allocation2] sm:$0xff] %vm216, %v409
    %412 = vst.msk [vmem:[#allocation2 + $0x8] sm:$0xff] %vm216, %v410
    // Predicated region
    $region26: #{tpu_custom_call.1} parent=1 // pred_check
      %p413 = pneg %p23
    $region27: #{tpu_custom_call.1} parent=1 // pred_check_branch
      %415 = sbr.rel (%p413) target = $region29
    $region28: #{tpu_custom_call.1} parent=1 // pred_region
      %v416 = vld [vmem:[#allocation2] sm:$0xff]
      %v417 = vld [vmem:[#allocation2 + $0x8] sm:$0xff]
      %418 = vst.msk [vmem:[#allocation3] sm:$0xff] %vm216, %v416
      %419 = vst.msk [vmem:[#allocation3 + $0x8] sm:$0xff] %vm216, %v417
    $region29: #{tpu_custom_call.1} parent=1 // pred_fallthru
      _
    // Predicated region
    $region30: #{tpu_custom_call.1} parent=1 // pred_check
      _
    $region31: #{tpu_custom_call.1} parent=1 // pred_check_branch
      %421 = sbr.rel (0) target = $region33
    $region32: #{tpu_custom_call.1} parent=1 // pred_region
      %s423 = ssub.s32 256, 256
      %424 = vsyncadd [#allocation4], %s423
      %s425 = sshll.u32 [#allocation3], 4
      %s426 = int_to_ptr.vmem [resolvable:$true] %s425
      %431 = dma.vmem_to_hbm [thread:$0]  %s426, 256, %s5, [#allocation4], 128, 128, 8
    $region33: #{tpu_custom_call.1} parent=1 // pred_fallthru
      _
    // Predicated region
    $region34: #{tpu_custom_call.1} parent=1 // pred_check
      _
    $region35: #{tpu_custom_call.1} parent=1 // pred_check_branch
      %433 = sbr.rel (0) target = $region37
    $region36: #{tpu_custom_call.1} parent=1 // pred_region
      %434 = dma.done [#allocation4], 256
    $region37: #{tpu_custom_call.1} parent=1 // pred_fallthru
      _
    %435 = vsyncpa [#allocation4], 1

</llo_original>
